<compile_context>
chip_gen: v7x
topology: tpu7x:2x2x1
jax: 0.10.0
libtpu: 0.0.40
codegen_flags: <defaults>
</compile_context>

<pallas_src>
import functools

import jax
import jax.numpy as jnp
from jax.experimental import pallas as pl
from jax.experimental.pallas import tpu as pltpu


def _round_up(x: int, m: int) -> int:
    return ((x + m - 1) // m) * m


def _pick_k_tile(Hs: int, block_k: int) -> int:
    """Largest multiple of 128 <= block_k that divides Hs; else the whole Hs."""
    if Hs <= block_k:
        return Hs
    t = (block_k // 128) * 128
    while t >= 128:
        if Hs % t == 0:
            return t
        t -= 128
    return Hs  # fallback: single K step (w1 fully resident)


def critic_head_kernel(x_ref, w1_ref, b1_ref, w2_ref, b2_ref, w3_ref, b3_ref,
                       out_ref, acc_ref):
    # x tile: [tile_b, tile_k] f32 (cast to bf16 here); w1 tile: [tile_k, Hd]
    # bf16 (streamed over k); w2: [Hd, Hd] bf16 (resident, single-buffered);
    # biases f32; accumulation f32.
    k = pl.program_id(1)

    @pl.when(k == 0)
    def _():
        acc_ref[...] = jnp.zeros_like(acc_ref)

    # Layer 1 partial product (MXU, f32 accumulation), streamed over Hs.
    acc_ref[...] += jnp.dot(x_ref[...].astype(jnp.bfloat16), w1_ref[...],
                            preferred_element_type=jnp.float32)

    @pl.when(k == pl.num_programs(1) - 1)
    def _():
        # Layer 1 epilogue: bias + ReLU in f32.
        h1 = jnp.maximum(acc_ref[...] + b1_ref[...], 0.0)
        # Layer 2: Linear(Hd, Hd) + ReLU (MXU, f32 accumulation).
        h2 = jnp.dot(h1.astype(jnp.bfloat16), w2_ref[...],
                     preferred_element_type=jnp.float32)
        h2 = jnp.maximum(h2 + b2_ref[...], 0.0)
        # Layer 3: Linear(Hd, 1). Output width 1 -> VPU multiply + lane
        # reduction against the w3 row instead of a degenerate N=1 MXU matmul.
        v = jnp.sum(h2 * w3_ref[...], axis=-1, keepdims=True) + b3_ref[0]
        out_ref[...] = v.astype(out_ref.dtype)


def _vmem_bytes(tile_b: int, tile_k: int, Hd: int) -> int:
    """Rough VMEM footprint of the pipeline buffers (padded to (8,128) tiles)."""
    pad = lambda r, c: _round_up(max(r, 1), 8) * _round_up(max(c, 1), 128)
    total = 0
    total += 2 * pad(tile_b, tile_k) * 4   # x blocks (f32, double-buffered)
    total += 2 * pad(tile_k, Hd) * 2       # streamed w1 tiles (bf16, 2 bufs)
    total += pad(1, Hd) * 4                # b1 (single-buffered)
    total += pad(Hd, Hd) * 2               # w2 resident (single-buffered)
    total += 2 * pad(1, Hd) * 4            # b2 + w3 row (single-buffered)
    total += 2 * pad(tile_b, 1) * 4        # out blocks
    total += pad(tile_b, Hd) * 4           # f32 accumulator scratch
    return total


@functools.partial(jax.jit, static_argnames=("block_b", "block_k"))
def critic_value_head(last_hidden, params, *, block_b=128, block_k=512):
    """last_hidden: [B, H_state] float32 -> value: [B, 1] float32."""
    w1, b1, w2, b2, w3, b3 = params
    B, Hs = last_hidden.shape
    Hd = w1.shape[1]

    # Batch tile: whole batch if it fits one tile (no padding needed at all);
    # else block_b rows (multiple of 16 -> full bf16 sublane / MXU-M packing).
    tile_b = B if B <= block_b else block_b
    tile_k = _pick_k_tile(Hs, block_k)
    grid = (pl.cdiv(B, tile_b), Hs // tile_k)

    w1b = w1.astype(jnp.bfloat16)
    w2b = w2.astype(jnp.bfloat16)
    w3_row = jnp.reshape(w3, (1, Hd)).astype(jnp.float32)   # layer-3 VPU row
    b3_s = jnp.reshape(b3, (1,)).astype(jnp.float32)        # SMEM scalar

    # Constant-index blocks stay resident across the whole grid; single-buffer
    # them so they do not pay 2x VMEM.
    resident = lambda shape: pl.BlockSpec(shape, lambda i, k: (0, 0),
                                          pipeline_mode=pl.Buffered(1))

    flops = 2 * B * (Hs * Hd + Hd * Hd + Hd)
    bytes_accessed = (B * Hs * 4 + Hs * Hd * 2 + Hd * Hd * 2
                      + 3 * Hd * 4 + 4 + B * 4)
    vmem_limit = max(32 << 20,
                     min(int(1.25 * _vmem_bytes(tile_b, tile_k, Hd)) + (4 << 20),
                         100 << 20))

    out = pl.pallas_call(
        critic_head_kernel,
        out_shape=jax.ShapeDtypeStruct((B, 1), jnp.float32),
        grid_spec=pltpu.PrefetchScalarGridSpec(
            num_scalar_prefetch=0,
            grid=grid,
            in_specs=[
                pl.BlockSpec((tile_b, tile_k), lambda i, k: (i, k)),  # x tile
                pl.BlockSpec((tile_k, Hd), lambda i, k: (k, 0)),      # w1 (streamed)
                resident((1, Hd)),                                    # b1 (f32)
                resident((Hd, Hd)),                                   # w2 (bf16)
                resident((1, Hd)),                                    # b2 (f32)
                resident((1, Hd)),                                    # w3 row (f32)
                pl.BlockSpec(memory_space=pltpu.MemorySpace.SMEM),    # b3 scalar
            ],
            out_specs=pl.BlockSpec((tile_b, 1), lambda i, k: (i, 0)),
            scratch_shapes=[pltpu.VMEM((tile_b, Hd), jnp.float32)],   # layer-1 acc
        ),
        compiler_params=pltpu.CompilerParams(
            dimension_semantics=("parallel", "arbitrary"),
            vmem_limit_bytes=vmem_limit,
        ),
        cost_estimate=pl.CostEstimate(flops=flops, transcendentals=0,
                                      bytes_accessed=bytes_accessed),
    )(last_hidden, w1b, b1, w2b, b2, w3_row, b3_s)

    return out


def init_params(key, hidden_state_dim, hidden_dim):
    """Deterministic init mimicking nn.Linear default (U[-1/sqrt(fan_in), +])."""
    ks = jax.random.split(key, 6)

    def lin(kw, kb, fan_in, fan_out):
        bound = 1.0 / jnp.sqrt(float(fan_in))
        w = jax.random.uniform(kw, (fan_in, fan_out), jnp.float32, -bound, bound)
        b = jax.random.uniform(kb, (1, fan_out), jnp.float32, -bound, bound)
        return w, b

    w1, b1 = lin(ks[0], ks[1], hidden_state_dim, hidden_dim)
    w2, b2 = lin(ks[2], ks[3], hidden_dim, hidden_dim)
    w3, b3 = lin(ks[4], ks[5], hidden_dim, 1)
    return (w1, b1, w2, b2, w3, b3)


def reference_value_head(last_hidden, params):
    """Pure-JAX reference with the same bf16 rounding the kernel applies."""
    w1, b1, w2, b2, w3, b3 = params
    r = lambda a: a.astype(jnp.bfloat16).astype(jnp.float32)
    x = r(last_hidden)
    h1 = jnp.maximum(x @ r(w1) + b1, 0.0)
    h2 = jnp.maximum(r(h1) @ r(w2) + b2, 0.0)
    return h2 @ w3 + b3


if __name__ == "__main__":
    # Small shapes consistent with the module: batch=2, seq=8,
    # llm hidden_size=128, critic hidden_dim=32.
    B, S, H_STATE, H_DIM = 2, 8, 128, 32

    key = jax.random.PRNGKey(0)
    k_hidden, k_params, k_big, k_kp, k_kx = jax.random.split(key, 5)

    # TODO(synk): tokenizer + frozen LLM forward (outputs.hidden_states[-1])
    # has no Pallas equivalent; stand in a synthetic hidden-state tensor.
    hidden_states = jax.random.normal(k_hidden, (B, S, H_STATE), jnp.float32)
    last_hidden = hidden_states[:, -1, :]          # [B, H_STATE]; matches .float()

    params = init_params(k_params, H_STATE, H_DIM)

    value = jax.block_until_ready(critic_value_head(last_hidden, params))
    ref = reference_value_head(last_hidden, params)
    assert value.shape == (B, 1)
    assert jnp.allclose(value, ref, atol=1e-2, rtol=1e-2)

    # Multi-tile batch grid + masked partial last block (200 rows -> two
    # 128-row tiles, the second one partial; no wrapper-side padding).
    big_hidden = jax.random.normal(k_big, (200, H_STATE), jnp.float32)
    big_value = jax.block_until_ready(critic_value_head(big_hidden, params))
    big_ref = reference_value_head(big_hidden, params)
    assert big_value.shape == (200, 1)
    assert jnp.allclose(big_value, big_ref, atol=1e-2, rtol=1e-2)

    # K-streaming reduction path: Hs=512 with block_k=256 -> two reduction
    # steps over streamed w1 tiles + the f32 VMEM accumulator.
    params_k = init_params(k_kp, 512, H_DIM)
    xk = jax.random.normal(k_kx, (16, 512), jnp.float32)
    vk = jax.block_until_ready(critic_value_head(xk, params_k, block_k=256))
    vk_ref = reference_value_head(xk, params_k)
    assert vk.shape == (16, 1)
    assert jnp.allclose(vk, vk_ref, atol=1e-2, rtol=1e-2)

    print("KERNEL_OK")
</pallas_src>

<mosaic_0001>
module attributes {stable_mosaic.version = 11 : i64} {
  func.func @critic_head_kernel(%arg0: i32, %arg1: i32, %arg2: memref<2x128xf32, #tpu.memory_space<vmem>>, %arg3: memref<128x32xbf16, #tpu.memory_space<vmem>>, %arg4: memref<1x32xf32, #tpu.memory_space<vmem>>, %arg5: memref<32x32xbf16, #tpu.memory_space<vmem>>, %arg6: memref<1x32xf32, #tpu.memory_space<vmem>>, %arg7: memref<1x32xf32, #tpu.memory_space<vmem>>, %arg8: memref<1xf32, #tpu.memory_space<smem>>, %arg9: memref<2x1xf32, #tpu.memory_space<vmem>>, %arg10: memref<2x32xf32, #tpu.memory_space<vmem>>) attributes {dimension_semantics = [#tpu.dimension_semantics<parallel>, #tpu.dimension_semantics<arbitrary>], iteration_bounds = array<i64: 1, 1>, scalar_prefetch = 0 : i64, scratch_operands = 1 : i64, tpu.core_type = #tpu.core_type<tc>, window_params = [{transform_indices = @transform_0, window_bounds = array<i64: 2, 128>}, {transform_indices = @transform_1, window_bounds = array<i64: 128, 32>}, {pipeline_mode = #tpu.pipeline_mode<synchronous>, transform_indices = @transform_2, window_bounds = array<i64: 1, 32>}, {pipeline_mode = #tpu.pipeline_mode<synchronous>, transform_indices = @transform_3, window_bounds = array<i64: 32, 32>}, {pipeline_mode = #tpu.pipeline_mode<synchronous>, transform_indices = @transform_4, window_bounds = array<i64: 1, 32>}, {pipeline_mode = #tpu.pipeline_mode<synchronous>, transform_indices = @transform_5, window_bounds = array<i64: 1, 32>}, {transform_indices = @transform_6, window_bounds = array<i64: 1>}, {transform_indices = @transform_7, window_bounds = array<i64: 2, 1>}]} {
    %c0_i32 = arith.constant 0 : i32
    %0 = arith.cmpi eq, %arg1, %c0_i32 : i32
    %1 = arith.extui %0 : i1 to i32
    %c0_i32_0 = arith.constant 0 : i32
    %2 = arith.cmpi ne, %1, %c0_i32_0 : i32
    scf.if %2 {
      %cst_10 = arith.constant 0.000000e+00 : f32
      %13 = vector.broadcast %cst_10 : f32 to vector<2x32xf32>
      %c0_11 = arith.constant 0 : index
      %c0_12 = arith.constant 0 : index
      %14 = vector.load %arg10[%c0_11, %c0_12] : memref<2x32xf32, #tpu.memory_space<vmem>>, vector<2x32xf32>
      tpu.vector_store %arg10[%c0_11, %c0_12], %13 {strides = array<i32>} : memref<2x32xf32, #tpu.memory_space<vmem>>, vector<2x32xf32>,
    } else {
    }
    %c0 = arith.constant 0 : index
    %c0_1 = arith.constant 0 : index
    %3 = vector.load %arg10[%c0, %c0_1] : memref<2x32xf32, #tpu.memory_space<vmem>>, vector<2x32xf32>
    %c0_2 = arith.constant 0 : index
    %c0_3 = arith.constant 0 : index
    %4 = vector.load %arg2[%c0_2, %c0_3] : memref<2x128xf32, #tpu.memory_space<vmem>>, vector<2x128xf32>
    %5 = arith.truncf %4 : vector<2x128xf32> to vector<2x128xbf16>
    %c0_4 = arith.constant 0 : index
    %c0_5 = arith.constant 0 : index
    %6 = vector.load %arg3[%c0_4, %c0_5] : memref<128x32xbf16, #tpu.memory_space<vmem>>, vector<128x32xbf16>
    %cst = arith.constant dense<0.000000e+00> : vector<2x32xf32>
    %7 = tpu.matmul %5, %6, %cst {dimension_numbers = #tpu.dot_dimension_numbers<[1], [0], [0], [1], [0, 0, 1, 1], [], []>} : vector<2x128xbf16>, vector<128x32xbf16>, vector<2x32xf32> -> vector<2x32xf32>
    %8 = arith.addf %3, %7 : vector<2x32xf32>
    %c0_6 = arith.constant 0 : index
    %c0_7 = arith.constant 0 : index
    %9 = vector.load %arg10[%c0_6, %c0_7] : memref<2x32xf32, #tpu.memory_space<vmem>>, vector<2x32xf32>
    tpu.vector_store %arg10[%c0_6, %c0_7], %8 {strides = array<i32>} : memref<2x32xf32, #tpu.memory_space<vmem>>, vector<2x32xf32>,
    %c0_i32_8 = arith.constant 0 : i32
    %10 = arith.cmpi eq, %arg1, %c0_i32_8 : i32
    %11 = arith.extui %10 : i1 to i32
    %c0_i32_9 = arith.constant 0 : i32
    %12 = arith.cmpi ne, %11, %c0_i32_9 : i32
    scf.if %12 {
      %c0_10 = arith.constant 0 : index
      %c0_11 = arith.constant 0 : index
      %13 = vector.load %arg10[%c0_10, %c0_11] : memref<2x32xf32, #tpu.memory_space<vmem>>, vector<2x32xf32>
      %c0_12 = arith.constant 0 : index
      %c0_13 = arith.constant 0 : index
      %14 = vector.load %arg4[%c0_12, %c0_13] : memref<1x32xf32, #tpu.memory_space<vmem>>, vector<1x32xf32>
      %15 = vector.broadcast %14 : vector<1x32xf32> to vector<2x32xf32>
      %16 = arith.addf %13, %15 : vector<2x32xf32>
      %cst_14 = arith.constant 0.000000e+00 : f32
      %17 = vector.broadcast %cst_14 : f32 to vector<2x32xf32>
      %18 = arith.maximumf %16, %17 : vector<2x32xf32>
      %19 = arith.truncf %18 : vector<2x32xf32> to vector<2x32xbf16>
      %c0_15 = arith.constant 0 : index
      %c0_16 = arith.constant 0 : index
      %20 = vector.load %arg5[%c0_15, %c0_16] : memref<32x32xbf16, #tpu.memory_space<vmem>>, vector<32x32xbf16>
      %cst_17 = arith.constant dense<0.000000e+00> : vector<2x32xf32>
      %21 = tpu.matmul %19, %20, %cst_17 {dimension_numbers = #tpu.dot_dimension_numbers<[1], [0], [0], [1], [0, 0, 1, 1], [], []>} : vector<2x32xbf16>, vector<32x32xbf16>, vector<2x32xf32> -> vector<2x32xf32>
      %c0_18 = arith.constant 0 : index
      %c0_19 = arith.constant 0 : index
      %22 = vector.load %arg6[%c0_18, %c0_19] : memref<1x32xf32, #tpu.memory_space<vmem>>, vector<1x32xf32>
      %23 = vector.broadcast %22 : vector<1x32xf32> to vector<2x32xf32>
      %24 = arith.addf %21, %23 : vector<2x32xf32>
      %cst_20 = arith.constant 0.000000e+00 : f32
      %25 = vector.broadcast %cst_20 : f32 to vector<2x32xf32>
      %26 = arith.maximumf %24, %25 : vector<2x32xf32>
      %c0_21 = arith.constant 0 : index
      %c0_22 = arith.constant 0 : index
      %27 = vector.load %arg7[%c0_21, %c0_22] : memref<1x32xf32, #tpu.memory_space<vmem>>, vector<1x32xf32>
      %28 = vector.broadcast %27 : vector<1x32xf32> to vector<2x32xf32>
      %29 = arith.mulf %26, %28 : vector<2x32xf32>
      %cst_23 = arith.constant dense<0.000000e+00> : vector<2xf32>
      %30 = vector.multi_reduction <add>, %29, %cst_23 [1] : vector<2x32xf32> to vector<2xf32>
      %31 = vector.shape_cast %30 : vector<2xf32> to vector<2x1xf32>
      %c0_24 = arith.constant 0 : index
      %32 = memref.load %arg8[%c0_24] : memref<1xf32, #tpu.memory_space<smem>>
      %33 = vector.broadcast %32 : f32 to vector<2x1xf32>
      %34 = arith.addf %31, %33 : vector<2x1xf32>
      %c0_25 = arith.constant 0 : index
      %c0_26 = arith.constant 0 : index
      %35 = vector.load %arg9[%c0_25, %c0_26] : memref<2x1xf32, #tpu.memory_space<vmem>>, vector<2x1xf32>
      tpu.vector_store %arg9[%c0_25, %c0_26], %34 {strides = array<i32>} : memref<2x1xf32, #tpu.memory_space<vmem>>, vector<2x1xf32>,
    } else {
    }
    return
  }
  func.func @transform_0(%arg0: i32, %arg1: i32) -> (i32, i32) {
    %c0_i32 = arith.constant 0 : i32
    return %arg0, %arg1 : i32, i32
  }
  func.func @transform_1(%arg0: i32, %arg1: i32) -> (i32, i32) {
    %c0_i32 = arith.constant 0 : i32
    %c0_i32_0 = arith.constant 0 : i32
    return %arg1, %c0_i32 : i32, i32
  }
  func.func @transform_2(%arg0: i32, %arg1: i32) -> (i32, i32) {
    %c0_i32 = arith.constant 0 : i32
    %c0_i32_0 = arith.constant 0 : i32
    %c0_i32_1 = arith.constant 0 : i32
    return %c0_i32, %c0_i32_0 : i32, i32
  }
  func.func @transform_3(%arg0: i32, %arg1: i32) -> (i32, i32) {
    %c0_i32 = arith.constant 0 : i32
    %c0_i32_0 = arith.constant 0 : i32
    %c0_i32_1 = arith.constant 0 : i32
    return %c0_i32, %c0_i32_0 : i32, i32
  }
  func.func @transform_4(%arg0: i32, %arg1: i32) -> (i32, i32) {
    %c0_i32 = arith.constant 0 : i32
    %c0_i32_0 = arith.constant 0 : i32
    %c0_i32_1 = arith.constant 0 : i32
    return %c0_i32, %c0_i32_0 : i32, i32
  }
  func.func @transform_5(%arg0: i32, %arg1: i32) -> (i32, i32) {
    %c0_i32 = arith.constant 0 : i32
    %c0_i32_0 = arith.constant 0 : i32
    %c0_i32_1 = arith.constant 0 : i32
    return %c0_i32, %c0_i32_0 : i32, i32
  }
  func.func @transform_6(%arg0: i32, %arg1: i32) -> i32 {
    %c0_i32 = arith.constant 0 : i32
    %c0_i32_0 = arith.constant 0 : i32
    return %c0_i32 : i32
  }
  func.func @transform_7(%arg0: i32, %arg1: i32) -> (i32, i32) {
    %c0_i32 = arith.constant 0 : i32
    %c0_i32_0 = arith.constant 0 : i32
    return %arg0, %c0_i32 : i32, i32
  }
}

</mosaic_0001>

<llo_original>
// kernel: critic_value_head.1
$region0: #{critic_value_head.1}
  #allocation0 [shape = 'u32[]', space=smem, size = 0x4, offset = 0x4, fixed_abs, tag = 'smem constant byte address 0x4 - core index']
  #allocation1 [shape = 'u32[144,128]{1,0:T(1,128)}', space=vmem, size = 0x12000, scoped, tag = 'internal scratch']
  #allocation2 [shape = 'f32[2,32]{1,0:T(2,128)}', space=vmem, size = 0x400, scoped, tag = 'scratch operand']
  #allocation3 [shape = 'f32[1]{0:T(128)S(6)}', space=smem, size = 0x200, scoped, tag = 'scoped memory for critic_value_head.1']
  %s0 = inlined_call_operand.vmem [shape: f32[2,128], index: 0, kind: input, shape index: {}]
  %s1 = inlined_call_operand.vmem [shape: bf16[128,32], index: 1, kind: input, shape index: {}]
  %s2 = inlined_call_operand.vmem [shape: f32[1,32], index: 2, kind: input, shape index: {}]
  %s3 = inlined_call_operand.vmem [shape: bf16[32,32], index: 3, kind: input, shape index: {}]
  %s4 = inlined_call_operand.vmem [shape: f32[1,32], index: 4, kind: input, shape index: {}]
  %s5 = inlined_call_operand.vmem [shape: f32[1,32], index: 5, kind: input, shape index: {}]
  %s6 = inlined_call_operand.<no memory space> [shape: f32[1], index: 6, kind: input, shape index: {}]
  %s7 = inlined_call_operand.vmem [shape: f32[2,1], index: 7, kind: output, shape index: {}]
  %s8 = sld [smem:[#allocation0]]
  $region46: #{critic_value_head.1} parent=0
    _
  %s10 = ssub.s32 1, %s8
  %s11 = scalar_select 0, %s10, %s8
  %12 = sst [smem:[#allocation3]] %s6
  // Predicated region
  $region2: #{critic_value_head.1} parent=0 // pred_check
    _
  $region3: #{critic_value_head.1} parent=0 // pred_check_branch
    %14 = sbr.rel (0) target = $region5
  $region4: #{critic_value_head.1} parent=0 // pred_region
    _
  $region5: #{critic_value_head.1} parent=0 // pred_fallthru
    _
  // Predicated region
  $region6: #{critic_value_head.1} parent=0 // pred_check
    _
  $region7: #{critic_value_head.1} parent=0 // pred_check_branch
    %16 = sbr.rel (0) target = $region9
  $region8: #{critic_value_head.1} parent=0 // pred_region
    _
  $region9: #{critic_value_head.1} parent=0 // pred_fallthru
    _
  // Predicated region
  $region10: #{critic_value_head.1} parent=0 // pred_check
    _
  $region11: #{critic_value_head.1} parent=0 // pred_check_branch
    %18 = sbr.rel (0) target = $region13
  $region12: #{critic_value_head.1} parent=0 // pred_region
    _
  $region13: #{critic_value_head.1} parent=0 // pred_fallthru
    _
  // Predicated region
  $region14: #{critic_value_head.1} parent=0 // pred_check
    _
  $region15: #{critic_value_head.1} parent=0 // pred_check_branch
    %20 = sbr.rel (0) target = $region17
  $region16: #{critic_value_head.1} parent=0 // pred_region
    _
  $region17: #{critic_value_head.1} parent=0 // pred_fallthru
    _
  // Predicated region
  $region18: #{critic_value_head.1} parent=0 // pred_check
    _
  $region19: #{critic_value_head.1} parent=0 // pred_check_branch
    %22 = sbr.rel (0) target = $region21
  $region20: #{critic_value_head.1} parent=0 // pred_region
    _
  $region21: #{critic_value_head.1} parent=0 // pred_fallthru
    _
  // Predicated region
  $region22: #{critic_value_head.1} parent=0 // pred_check
    _
  $region23: #{critic_value_head.1} parent=0 // pred_check_branch
    %24 = sbr.rel (0) target = $region25
  $region24: #{critic_value_head.1} parent=0 // pred_region
    _
  $region25: #{critic_value_head.1} parent=0 // pred_fallthru
    _
  // Predicated region
  $region26: #{critic_value_head.1} parent=0 // pred_check
    _
  $region27: #{critic_value_head.1} parent=0 // pred_check_branch
    %26 = sbr.rel (0) target = $region29
  $region28: #{critic_value_head.1} parent=0 // pred_region
    _
  $region29: #{critic_value_head.1} parent=0 // pred_fallthru
    _
  %p28 = scmp.eq.s32.totalorder 0, 0
  // Predicated region
  $region30: #{critic_value_head.1} parent=0 // pred_check
    %p29 = pneg %p28
  $region31: #{critic_value_head.1} parent=0 // pred_check_branch
    %31 = sbr.rel (%p29) target = $region33
  $region32: #{critic_value_head.1} parent=0 // pred_region
    %vm32 = vcmask 254976
    %33 = vst.msk [vmem:[#allocation2] sm:$0x3] %vm32, 0.0
  $region33: #{critic_value_head.1} parent=0 // pred_fallthru
    _
  %v34 = vld [vmem:[#allocation2] sm:$0x3]
  %v35 = vld [vmem:[%s0] sm:$0x3]
  %v36 = vpack.c.bf16 %v35, %v35
  %v37 = vld [vmem:[%s1] sm:$0xf]
  %v38 = vld [vmem:[%s1 + $0x4] sm:$0xf]
  %v39 = vld [vmem:[%s1 + $0x8] sm:$0xf]
  %v40 = vld [vmem:[%s1 + $0xc] sm:$0xf]
  %v41 = vld [vmem:[%s1 + $0x10] sm:$0xf]
  %v42 = vld [vmem:[%s1 + $0x14] sm:$0xf]
  %v43 = vld [vmem:[%s1 + $0x18] sm:$0xf]
  %v44 = vld [vmem:[%s1 + $0x1c] sm:$0xf]
  %v45 = vld [vmem:[%s1 + $0x20] sm:$0xf]
  %v46 = vld [vmem:[%s1 + $0x24] sm:$0xf]
  %v47 = vld [vmem:[%s1 + $0x28] sm:$0xf]
  %v48 = vld [vmem:[%s1 + $0x2c] sm:$0xf]
  %v49 = vld [vmem:[%s1 + $0x30] sm:$0xf]
  %v50 = vld [vmem:[%s1 + $0x34] sm:$0xf]
  %v51 = vld [vmem:[%s1 + $0x38] sm:$0xf]
  %v52 = vld [vmem:[%s1 + $0x3c] sm:$0xf]
  %v69 = vunpack.c.l.b16 %v37
  %v70 = vunpack.c.l.b16 %v38
  %v71 = vunpack.c.l.b16 %v39
  %v72 = vunpack.c.l.b16 %v40
  %v73 = vunpack.c.l.b16 %v41
  %v74 = vunpack.c.l.b16 %v42
  %v75 = vunpack.c.l.b16 %v43
  %v76 = vunpack.c.l.b16 %v44
  %v77 = vunpack.c.l.b16 %v45
  %v78 = vunpack.c.l.b16 %v46
  %v79 = vunpack.c.l.b16 %v47
  %v80 = vunpack.c.l.b16 %v48
  %v81 = vunpack.c.l.b16 %v49
  %v82 = vunpack.c.l.b16 %v50
  %v83 = vunpack.c.l.b16 %v51
  %v84 = vunpack.c.l.b16 %v52
  %v85 = vpack.c.b16 %v70, %v69
  %v86 = vpack.c.b16 %v72, %v71
  %v87 = vpack.c.b16 %v74, %v73
  %v88 = vpack.c.b16 %v76, %v75
  %v89 = vpack.c.b16 %v78, %v77
  %v90 = vpack.c.b16 %v80, %v79
  %v91 = vpack.c.b16 %v82, %v81
  %v92 = vpack.c.b16 %v84, %v83
  %101 = vmatprep.subr.bf16.mxu0 0
  %102 = vmatpush1.bf16.msra.mxu0 %v85
  %103 = vmatprep.subr.bf16.mxu0 0
  %104 = vmatpush1.bf16.msra.mxu0 %v86
  %105 = vmatprep.subr.bf16.mxu0 0
  %106 = vmatpush1.bf16.msra.mxu0 %v87
  %107 = vmatprep.subr.bf16.mxu0 0
  %108 = vmatpush1.bf16.msra.mxu0 %v88
  %109 = vmatprep.subr.bf16.mxu0 0
  %110 = vmatpush1.bf16.msra.mxu0 %v89
  %111 = vmatprep.subr.bf16.mxu0 0
  %112 = vmatpush1.bf16.msra.mxu0 %v90
  %113 = vmatprep.subr.bf16.mxu0 0
  %114 = vmatpush1.bf16.msra.mxu0 %v91
  %115 = vmatprep.subr.bf16.mxu0 0
  %116 = vmatpush1.bf16.msra.mxu0 %v92
  %117 = vmatprep.subr.bf16.mxu0 0
  %118 = vmatpush1.bf16.msra.mxu0 0
  %119 = vmatprep.subr.bf16.mxu0 0
  %120 = vmatpush1.bf16.msra.mxu0 0
  %121 = vmatprep.subr.bf16.mxu0 0
  %122 = vmatpush1.bf16.msra.mxu0 0
  %123 = vmatprep.subr.bf16.mxu0 0
  %124 = vmatpush1.bf16.msra.mxu0 0
  %125 = vmatprep.subr.bf16.mxu0 0
  %126 = vmatpush1.bf16.msra.mxu0 0
  %127 = vmatprep.subr.bf16.mxu0 0
  %128 = vmatpush1.bf16.msra.mxu0 0
  %129 = vmatprep.subr.bf16.mxu0 0
  %130 = vmatpush1.bf16.msra.mxu0 0
  %131 = vmatprep.subr.bf16.mxu0 0
  %132 = vmatpush1.bf16.msra.mxu0 0
  %133 = vmatprep.mubr.bf16.mxu0 0
  %134 = vmatmul.mubr.bf16.gmra.mrb[0].mxu0 %v36
  %v135 = vpop.f32.mrb[0].mxu0
  %v136 = vadd.f32 0.0, %v135
  %v137 = vpop.f32.mrb[0].mxu0
  %v138 = vpop.f32.mrb[0].mxu0
  %v139 = vpop.f32.mrb[0].mxu0
  %140 = vdwg.mxu0
  %v141 = vadd.f32 %v34, %v136
  %vm142 = vcmask 254976
  %143 = vst.msk [vmem:[#allocation2] sm:$0x3] %vm142, %v141
  // Predicated region
  $region34: #{critic_value_head.1} parent=0 // pred_check
    %p144 = pneg %p28
  $region35: #{critic_value_head.1} parent=0 // pred_check_branch
    %146 = sbr.rel (%p144) target = $region37
  $region36: #{critic_value_head.1} parent=0 // pred_region
    %v147 = vld [vmem:[#allocation2] sm:$0x3]
    %v148 = vld [vmem:[%s2] sm:$0x1]
    %v150 = vlaneseq
    %v151 = vshrl.u32 %v150, 7
    %v152 = vsub.s32 0, %v151
    %v153 = vrot.slane %v148, %v152
    %v155 = vadd.f32 %v147, %v153
    %v156 = vmax.f32 %v155, 0.0
    %v157 = vpack.c.bf16 %v156, %v156
    %v158 = vld [vmem:[%s3] sm:$0xf]
    %v159 = vld [vmem:[%s3 + $0x4] sm:$0xf]
    %v160 = vld [vmem:[%s3 + $0x8] sm:$0xf]
    %v161 = vld [vmem:[%s3 + $0xc] sm:$0xf]
    %v162 = vld [vmem:[%s4] sm:$0x1]
    %v164 = vlaneseq
    %v165 = vshrl.u32 %v164, 7
    %v166 = vsub.s32 0, %v165
    %v167 = vrot.slane %v162, %v166
    %v173 = vunpack.c.l.b16 %v158
    %v174 = vunpack.c.l.b16 %v159
    %v175 = vunpack.c.l.b16 %v160
    %v176 = vunpack.c.l.b16 %v161
    %v177 = vpack.c.b16 %v174, %v173
    %v178 = vpack.c.b16 %v176, %v175
    %vm181 = vcmask 261120
    %v183 = vsel %vm181, %v157, 0
    %185 = vmatprep.subr.bf16.mxu0 0
    %186 = vmatpush1.bf16.msra.mxu0 %v177
    %187 = vmatprep.subr.bf16.mxu0 0
    %188 = vmatpush1.bf16.msra.mxu0 %v178
    %189 = vmatprep.subr.bf16.mxu0 0
    %190 = vmatpush1.bf16.msra.mxu0 0
    %191 = vmatprep.subr.bf16.mxu0 0
    %192 = vmatpush1.bf16.msra.mxu0 0
    %193 = vmatprep.subr.bf16.mxu0 0
    %194 = vmatpush1.bf16.msra.mxu0 0
    %195 = vmatprep.subr.bf16.mxu0 0
    %196 = vmatpush1.bf16.msra.mxu0 0
    %197 = vmatprep.subr.bf16.mxu0 0
    %198 = vmatpush1.bf16.msra.mxu0 0
    %199 = vmatprep.subr.bf16.mxu0 0
    %200 = vmatpush1.bf16.msra.mxu0 0
    %201 = vmatprep.subr.bf16.mxu0 0
    %202 = vmatpush1.bf16.msra.mxu0 0
    %203 = vmatprep.subr.bf16.mxu0 0
    %204 = vmatpush1.bf16.msra.mxu0 0
    %205 = vmatprep.subr.bf16.mxu0 0
    %206 = vmatpush1.bf16.msra.mxu0 0
    %207 = vmatprep.subr.bf16.mxu0 0
    %208 = vmatpush1.bf16.msra.mxu0 0
    %209 = vmatprep.subr.bf16.mxu0 0
    %210 = vmatpush1.bf16.msra.mxu0 0
    %211 = vmatprep.subr.bf16.mxu0 0
    %212 = vmatpush1.bf16.msra.mxu0 0
    %213 = vmatprep.subr.bf16.mxu0 0
    %214 = vmatpush1.bf16.msra.mxu0 0
    %215 = vmatprep.subr.bf16.mxu0 0
    %216 = vmatpush1.bf16.msra.mxu0 0
    %217 = vmatprep.mubr.bf16.mxu0 0
    %218 = vmatmul.mubr.bf16.gmra.mrb[0].mxu0 %v183
    %v219 = vpop.f32.mrb[0].mxu0
    %v220 = vadd.f32 %v167, %v219
    %v221 = vpop.f32.mrb[0].mxu0
    %v222 = vpop.f32.mrb[0].mxu0
    %v223 = vpop.f32.mrb[0].mxu0
    %224 = vdwg.mxu0
    %v225 = vmax.f32 %v220, 0.0
    %v226 = vld [vmem:[%s5] sm:$0x1]
    %v228 = vlaneseq
    %v229 = vshrl.u32 %v228, 7
    %v230 = vsub.s32 0, %v229
    %v231 = vrot.slane %v226, %v230
    %v233 = vmul.f32 %v225, %v231
    %v234 = vsel %vm142, %v233, 0.0
    %235 = vadd.xlane.f32.xlu0 %v234
    %v236 = vpop.xlane.xlu0 %235
    %s237 = sld [smem:[#allocation3]]
    %v238 = vstv %s237
    %v239 = vadd.f32 %v236, %v238
    %vm240 = vcmask 1024
    %241 = vst.msk [vmem:[%s7] sm:$0x3] %vm240, %v239
  $region37: #{critic_value_head.1} parent=0 // pred_fallthru
    _
  // Predicated region
  $region38: #{critic_value_head.1} parent=0 // pred_check
    _
  $region39: #{critic_value_head.1} parent=0 // pred_check_branch
    %243 = sbr.rel (0) target = $region41
  $region40: #{critic_value_head.1} parent=0 // pred_region
    _
  $region41: #{critic_value_head.1} parent=0 // pred_fallthru
    _
  // Predicated region
  $region42: #{critic_value_head.1} parent=0 // pred_check
    _
  $region43: #{critic_value_head.1} parent=0 // pred_check_branch
    %245 = sbr.rel (0) target = $region45
  $region44: #{critic_value_head.1} parent=0 // pred_region
    _
  $region45: #{critic_value_head.1} parent=0 // pred_fallthru
    _

</llo_original>
